<compile_context>
chip_gen: v7x
topology: tpu7x:2x2x1
jax: 0.10.0
libtpu: 0.0.40
codegen_flags: <defaults>
</compile_context>

<pallas_src>
import functools

import jax
import jax.numpy as jnp
from jax.experimental import pallas as pl
from jax.experimental.pallas import tpu as pltpu


def _round_up(x, m):
    return (x + m - 1) // m * m


def _cdiv(a, b):
    return -(-a // b)


def _default_vmem_budget_bytes():
    """Per-generation VMEM budget for the streamed batch tile."""
    try:
        cap = pltpu.get_tpu_info().vmem_capacity_bytes
    except Exception:  # no TPU info available -> conservative fallback
        cap = 64 * 1024 * 1024
    # Stay comfortably below the smallest scoped-VMEM default (v5e: 16 MiB)
    # while still scaling with the chip (v7x has only 64 MiB physical).
    return min(max(cap // 8, 12 * 1024 * 1024), 24 * 1024 * 1024)


def _pick_tile_b(batch, s_dim, a_dim, hidden, in_itemsize, budget_bytes):
    """Largest batch tile that fits the VMEM budget (fewer, fatter grid steps)."""
    per_row = (2 * (s_dim + a_dim) * in_itemsize   # double-buffered s/a tiles
               + 3 * hidden * 4)                   # h1/h2/prod f32 intermediates
    tile = max(8, budget_bytes // max(per_row, 1))
    return min(tile, 32 * 1024)


def _actor_loss_kernel(s_ref, a_ref, w1s_ref, w1a_ref, b1_ref, w2_ref, b2_ref,
                       w3_ref, out_ref, *, batch, tile_b, tiles_per_partial,
                       has_ragged, compute_dtype):
    """One batch tile of the critic MLP, accumulated into a [1,1,H] partial.

    s_ref : [TB, S]  state tile   (HBM dtype, streamed, cast in-kernel)
    a_ref : [TB, A]  action tile  (HBM dtype, streamed, cast in-kernel)
    w1s   : [S, H]   w1a : [A, H]   b1 : [1, H]     (VMEM-resident)
    w2    : [H, H]   b2  : [1, H]   w3  : [1, H]    (VMEM-resident)
    out   : [1, 1, H] f32 partial sum_rows(h2 * w3) for this "parallel" slice;
            resident across the "arbitrary" batch axis (accumulator).
    """
    c = pl.program_id(0)                       # partial (per-TensorCore) index
    t = pl.program_id(1)                       # batch-tile index within partial
    g = c * tiles_per_partial + t              # global (logical) batch tile

    @pl.when(t == 0)
    def _():
        out_ref[...] = jnp.zeros_like(out_ref)

    s = s_ref[...].astype(compute_dtype)
    a = a_ref[...].astype(compute_dtype)

    # ---- layer 1: split-W1 matmuls (no concat), f32 accumulation on MXU ----
    h1 = (jnp.dot(s, w1s_ref[...], preferred_element_type=jnp.float32)
          + jnp.dot(a, w1a_ref[...], preferred_element_type=jnp.float32)
          + b1_ref[...])
    h1 = jnp.maximum(h1, 0.0)                  # f32 elementwise (v5e-safe)

    # ---- layer 2 ----
    h2 = jnp.dot(h1.astype(w2_ref.dtype), w2_ref[...],
                 preferred_element_type=jnp.float32) + b2_ref[...]
    h2 = jnp.maximum(h2, 0.0)

    # ---- layer 3 as VPU mul; reduce over rows only (lane-resident partial) ----
    prod = h2 * w3_ref[...].astype(jnp.float32)          # [TB, H]

    if not has_ragged:
        out_ref[...] += jnp.sum(prod, axis=0, keepdims=True)[None]
    else:
        is_ragged = (g + 1) * tile_b > batch             # this tile has pad rows

        @pl.when(jnp.logical_not(is_ragged))
        def _():                                          # full tile: no masking
            out_ref[...] += jnp.sum(prod, axis=0, keepdims=True)[None]

        @pl.when(is_ragged)
        def _():                                          # ragged tile only
            row = g * tile_b + jax.lax.broadcasted_iota(jnp.int32, (tile_b, 1), 0)
            valid = row < batch
            masked = jnp.where(valid, prod, 0.0)          # select -> NaN-safe
            out_ref[...] += jnp.sum(masked, axis=0, keepdims=True)[None]


@functools.partial(jax.jit,
                   static_argnames=("tile_b", "compute_dtype", "num_partials"))
def actor_loss(action, state, params, *, tile_b=None,
               compute_dtype=jnp.float32, num_partials=2):
    """loss = -mean(critic(state, action)); single streamed Pallas call."""
    w1, b1, w2, b2, w3, b3 = params
    B, S = state.shape
    A = action.shape[1]
    H = w1.shape[1]

    in_itemsize = jnp.dtype(state.dtype).itemsize
    if tile_b is None:
        tile_b = _pick_tile_b(B, S, A, H, in_itemsize, _default_vmem_budget_bytes())
    tile_b = min(_round_up(tile_b, 8), _round_up(B, 8))

    n_tiles = _cdiv(B, tile_b)                       # data tiles (no wrapper pad)
    P = max(1, min(num_partials, n_tiles))           # per-TensorCore partials
    T = _cdiv(n_tiles, P)                            # logical tiles per partial
    has_ragged = (P * T * tile_b) != B               # any tile with pad rows?

    cdt = compute_dtype
    # Weights are tiny: one-time cast/reshape in the wrapper is fine.  The
    # streamed state/action stay in their HBM dtype and are cast in-kernel.
    w1s = w1[:S].astype(cdt)                         # [S, H]
    w1a = w1[S:].astype(cdt)                         # [A, H]
    w2c = w2.astype(cdt)                             # [H, H]
    w3_row = w3.reshape(1, H).astype(cdt)            # [1, H] (transposed layer 3)
    b1f = b1.reshape(1, H).astype(jnp.float32)
    b2f = b2.reshape(1, H).astype(jnp.float32)
    b3f = jnp.asarray(b3, jnp.float32).reshape(())

    last_data_tile = n_tiles - 1

    def batch_idx(c, t):
        # Clamp so a fully-empty logical tile (when n_tiles % P != 0) still maps
        # to an in-bounds block; its rows are masked out inside the kernel.
        return (jnp.minimum(c * T + t, last_data_tile), 0)

    def const_idx(c, t):
        return (0, 0)

    w_itemsize = jnp.dtype(cdt).itemsize
    est_vmem = (2 * tile_b * (S + A) * in_itemsize            # dbl-buffered s/a
                + 3 * tile_b * H * 4                          # h1/h2/prod (f32)
                + 2 * ((S + A) * H + H * H + 3 * H) * max(w_itemsize, 4)
                + 2 * P * H * 4)
    vmem_limit = int(min(48 * 1024 * 1024, max(16 * 1024 * 1024, 2 * est_vmem)))

    flops = 2 * B * ((S + A) * H + H * H + H)
    bytes_accessed = (B * (S + A) * in_itemsize               # streamed once, no pad
                      + ((S + A) * H + H * H + 3 * H) * max(w_itemsize, 4)
                      + P * H * 4)

    kernel = functools.partial(_actor_loss_kernel, batch=B, tile_b=tile_b,
                               tiles_per_partial=T, has_ragged=has_ragged,
                               compute_dtype=cdt)

    grid_spec = pltpu.PrefetchScalarGridSpec(
        num_scalar_prefetch=0,
        grid=(P, T),
        in_specs=[
            pl.BlockSpec((tile_b, S), batch_idx),     # state  (streamed)
            pl.BlockSpec((tile_b, A), batch_idx),     # action (streamed)
            pl.BlockSpec((S, H), const_idx),          # W1_s (resident)
            pl.BlockSpec((A, H), const_idx),          # W1_a (resident)
            pl.BlockSpec((1, H), const_idx),          # b1   (resident)
            pl.BlockSpec((H, H), const_idx),          # W2   (resident)
            pl.BlockSpec((1, H), const_idx),          # b2   (resident)
            pl.BlockSpec((1, H), const_idx),          # W3^T (resident)
        ],
        out_specs=pl.BlockSpec((1, 1, H), lambda c, t: (c, 0, 0)),
    )

    partials = pl.pallas_call(
        kernel,
        out_shape=jax.ShapeDtypeStruct((P, 1, H), jnp.float32),
        grid_spec=grid_spec,
        compiler_params=pltpu.CompilerParams(
            dimension_semantics=("parallel", "arbitrary"),
            vmem_limit_bytes=vmem_limit),
        cost_estimate=pl.CostEstimate(flops=int(flops), transcendentals=0,
                                      bytes_accessed=int(bytes_accessed)),
    )(state, action, w1s, w1a, b1f, w2c, b2f, w3_row)

    # Combine the per-TensorCore lane-resident partials (P*H floats) and apply
    # mean / b3 / negation -- trivial wrapper-side ops.
    return -(jnp.sum(partials) / jnp.float32(B) + b3f)


def init_critic_params(key, state_dim, action_dim, hidden):
    """Deterministic PyTorch-style (U[-1/sqrt(fan_in), 1/sqrt(fan_in)]) init."""
    in_dim = state_dim + action_dim
    ks = jax.random.split(key, 6)

    def unif(k, shape, fan_in):
        bound = 1.0 / jnp.sqrt(jnp.float32(fan_in))
        return jax.random.uniform(k, shape, jnp.float32, -bound, bound)

    w1 = unif(ks[0], (in_dim, hidden), in_dim)
    b1 = unif(ks[1], (1, hidden), in_dim)
    w2 = unif(ks[2], (hidden, hidden), hidden)
    b2 = unif(ks[3], (1, hidden), hidden)
    w3 = unif(ks[4], (hidden, 1), hidden)
    b3 = unif(ks[5], (1, 1), hidden)
    return (w1, b1, w2, b2, w3, b3)


def actor_loss_reference(action, state, params):
    """Pure-JAX reference for correctness check."""
    w1, b1, w2, b2, w3, b3 = params
    x = jnp.concatenate([state, action], axis=-1).astype(jnp.float32)
    h1 = jnp.maximum(x @ w1 + b1, 0.0)
    h2 = jnp.maximum(h1 @ w2 + b2, 0.0)
    q = h2 @ w3 + b3
    return -jnp.mean(q)


if __name__ == "__main__":
    # Small shapes; B deliberately exercises ragged tiles and the per-core split.
    B, STATE_DIM, ACTION_DIM, HIDDEN = 200, 16, 8, 32

    key = jax.random.PRNGKey(0)
    k_state, k_action, k_params = jax.random.split(key, 3)

    state = jax.random.normal(k_state, (B, STATE_DIM), jnp.float32)
    action = jax.random.normal(k_action, (B, ACTION_DIM), jnp.float32)
    params = init_critic_params(k_params, STATE_DIM, ACTION_DIM, HIDDEN)

    ref = actor_loss_reference(action, state, params)

    # 1) Auto tile: one fat tile, the partial split collapses to 1.
    loss_auto = actor_loss(action, state, params)
    # 2) Multi-tile + ragged last tile + 2-way "parallel" partial split.
    loss_tiled = actor_loss(action, state, params, tile_b=64, num_partials=2)
    # 3) tiles-per-partial rounding leaves one fully-empty (clamped) tile.
    loss_empty = actor_loss(action, state, params, tile_b=96, num_partials=2)

    jax.block_until_ready((loss_auto, loss_tiled, loss_empty))

    for got in (loss_auto, loss_tiled, loss_empty):
        assert jnp.allclose(got, ref, atol=1e-5, rtol=1e-4), (got, ref)

    print("KERNEL_OK")
</pallas_src>

<mosaic_0001>
module attributes {stable_mosaic.version = 11 : i64} {
  func.func @_actor_loss_kernel(%arg0: i32, %arg1: i32, %arg2: memref<200x16xf32, #tpu.memory_space<vmem>>, %arg3: memref<200x8xf32, #tpu.memory_space<vmem>>, %arg4: memref<16x32xf32, #tpu.memory_space<vmem>>, %arg5: memref<8x32xf32, #tpu.memory_space<vmem>>, %arg6: memref<1x32xf32, #tpu.memory_space<vmem>>, %arg7: memref<32x32xf32, #tpu.memory_space<vmem>>, %arg8: memref<1x32xf32, #tpu.memory_space<vmem>>, %arg9: memref<1x32xf32, #tpu.memory_space<vmem>>, %arg10: memref<1x1x32xf32, #tpu.memory_space<vmem>>) attributes {dimension_semantics = [#tpu.dimension_semantics<parallel>, #tpu.dimension_semantics<arbitrary>], iteration_bounds = array<i64: 1, 1>, scalar_prefetch = 0 : i64, scratch_operands = 0 : i64, tpu.core_type = #tpu.core_type<tc>, window_params = [{transform_indices = @transform_0, window_bounds = array<i64: 200, 16>}, {transform_indices = @transform_1, window_bounds = array<i64: 200, 8>}, {pipeline_mode = #tpu.pipeline_mode<synchronous>, transform_indices = @transform_2, window_bounds = array<i64: 16, 32>}, {pipeline_mode = #tpu.pipeline_mode<synchronous>, transform_indices = @transform_3, window_bounds = array<i64: 8, 32>}, {pipeline_mode = #tpu.pipeline_mode<synchronous>, transform_indices = @transform_4, window_bounds = array<i64: 1, 32>}, {pipeline_mode = #tpu.pipeline_mode<synchronous>, transform_indices = @transform_5, window_bounds = array<i64: 32, 32>}, {pipeline_mode = #tpu.pipeline_mode<synchronous>, transform_indices = @transform_6, window_bounds = array<i64: 1, 32>}, {pipeline_mode = #tpu.pipeline_mode<synchronous>, transform_indices = @transform_7, window_bounds = array<i64: 1, 32>}, {transform_indices = @transform_8, window_bounds = array<i64: 1, 1, 32>}]} {
    %c0_i32 = arith.constant 0 : i32
    %0 = arith.cmpi eq, %arg1, %c0_i32 : i32
    %1 = arith.extui %0 : i1 to i32
    %c0_i32_0 = arith.constant 0 : i32
    %2 = arith.cmpi ne, %1, %c0_i32_0 : i32
    scf.if %2 {
      %cst_27 = arith.constant 0.000000e+00 : f32
      %31 = vector.broadcast %cst_27 : f32 to vector<1x1x32xf32>
      %c0_28 = arith.constant 0 : index
      %c0_29 = arith.constant 0 : index
      %c0_30 = arith.constant 0 : index
      %32 = vector.load %arg10[%c0_28, %c0_29, %c0_30] : memref<1x1x32xf32, #tpu.memory_space<vmem>>, vector<1x1x32xf32>
      tpu.vector_store %arg10[%c0_28, %c0_29, %c0_30], %31 {strides = array<i32>} : memref<1x1x32xf32, #tpu.memory_space<vmem>>, vector<1x1x32xf32>,
    } else {
    }
    %c0 = arith.constant 0 : index
    %c0_1 = arith.constant 0 : index
    %3 = vector.load %arg2[%c0, %c0_1] : memref<200x16xf32, #tpu.memory_space<vmem>>, vector<200x16xf32>
    %c0_2 = arith.constant 0 : index
    %c0_3 = arith.constant 0 : index
    %4 = vector.load %arg3[%c0_2, %c0_3] : memref<200x8xf32, #tpu.memory_space<vmem>>, vector<200x8xf32>
    %c0_4 = arith.constant 0 : index
    %c0_5 = arith.constant 0 : index
    %5 = vector.load %arg4[%c0_4, %c0_5] : memref<16x32xf32, #tpu.memory_space<vmem>>, vector<16x32xf32>
    %cst = arith.constant dense<0.000000e+00> : vector<200x32xf32>
    %6 = tpu.matmul %3, %5, %cst {dimension_numbers = #tpu.dot_dimension_numbers<[1], [0], [0], [1], [0, 0, 1, 1], [], []>} : vector<200x16xf32>, vector<16x32xf32>, vector<200x32xf32> -> vector<200x32xf32>
    %c0_6 = arith.constant 0 : index
    %c0_7 = arith.constant 0 : index
    %7 = vector.load %arg5[%c0_6, %c0_7] : memref<8x32xf32, #tpu.memory_space<vmem>>, vector<8x32xf32>
    %cst_8 = arith.constant dense<0.000000e+00> : vector<200x32xf32>
    %8 = tpu.matmul %4, %7, %cst_8 {dimension_numbers = #tpu.dot_dimension_numbers<[1], [0], [0], [1], [0, 0, 1, 1], [], []>} : vector<200x8xf32>, vector<8x32xf32>, vector<200x32xf32> -> vector<200x32xf32>
    %9 = arith.addf %6, %8 : vector<200x32xf32>
    %c0_9 = arith.constant 0 : index
    %c0_10 = arith.constant 0 : index
    %10 = vector.load %arg6[%c0_9, %c0_10] : memref<1x32xf32, #tpu.memory_space<vmem>>, vector<1x32xf32>
    %11 = vector.broadcast %10 : vector<1x32xf32> to vector<200x32xf32>
    %12 = arith.addf %9, %11 : vector<200x32xf32>
    %cst_11 = arith.constant 0.000000e+00 : f32
    %13 = vector.broadcast %cst_11 : f32 to vector<200x32xf32>
    %14 = arith.maximumf %12, %13 : vector<200x32xf32>
    %c0_12 = arith.constant 0 : index
    %c0_13 = arith.constant 0 : index
    %15 = vector.load %arg7[%c0_12, %c0_13] : memref<32x32xf32, #tpu.memory_space<vmem>>, vector<32x32xf32>
    %cst_14 = arith.constant dense<0.000000e+00> : vector<200x32xf32>
    %16 = tpu.matmul %14, %15, %cst_14 {dimension_numbers = #tpu.dot_dimension_numbers<[1], [0], [0], [1], [0, 0, 1, 1], [], []>} : vector<200x32xf32>, vector<32x32xf32>, vector<200x32xf32> -> vector<200x32xf32>
    %c0_15 = arith.constant 0 : index
    %c0_16 = arith.constant 0 : index
    %17 = vector.load %arg8[%c0_15, %c0_16] : memref<1x32xf32, #tpu.memory_space<vmem>>, vector<1x32xf32>
    %18 = vector.broadcast %17 : vector<1x32xf32> to vector<200x32xf32>
    %19 = arith.addf %16, %18 : vector<200x32xf32>
    %cst_17 = arith.constant 0.000000e+00 : f32
    %20 = vector.broadcast %cst_17 : f32 to vector<200x32xf32>
    %21 = arith.maximumf %19, %20 : vector<200x32xf32>
    %c0_18 = arith.constant 0 : index
    %c0_19 = arith.constant 0 : index
    %22 = vector.load %arg9[%c0_18, %c0_19] : memref<1x32xf32, #tpu.memory_space<vmem>>, vector<1x32xf32>
    %23 = vector.broadcast %22 : vector<1x32xf32> to vector<200x32xf32>
    %24 = arith.mulf %21, %23 : vector<200x32xf32>
    %c0_20 = arith.constant 0 : index
    %c0_21 = arith.constant 0 : index
    %c0_22 = arith.constant 0 : index
    %25 = vector.load %arg10[%c0_20, %c0_21, %c0_22] : memref<1x1x32xf32, #tpu.memory_space<vmem>>, vector<1x1x32xf32>
    %cst_23 = arith.constant dense<0.000000e+00> : vector<32xf32>
    %26 = vector.multi_reduction <add>, %24, %cst_23 [0] : vector<200x32xf32> to vector<32xf32>
    %27 = vector.shape_cast %26 : vector<32xf32> to vector<1x32xf32>
    %28 = vector.shape_cast %27 : vector<1x32xf32> to vector<1x1x32xf32>
    %29 = arith.addf %25, %28 : vector<1x1x32xf32>
    %c0_24 = arith.constant 0 : index
    %c0_25 = arith.constant 0 : index
    %c0_26 = arith.constant 0 : index
    %30 = vector.load %arg10[%c0_24, %c0_25, %c0_26] : memref<1x1x32xf32, #tpu.memory_space<vmem>>, vector<1x1x32xf32>
    tpu.vector_store %arg10[%c0_24, %c0_25, %c0_26], %29 {strides = array<i32>} : memref<1x1x32xf32, #tpu.memory_space<vmem>>, vector<1x1x32xf32>,
    return
  }
  func.func @transform_0(%arg0: i32, %arg1: i32) -> (i32, i32) {
    %c1_i32 = arith.constant 1 : i32
    %0 = arith.muli %arg0, %c1_i32 : i32
    %1 = arith.addi %0, %arg1 : i32
    %c0_i32 = arith.constant 0 : i32
    %2 = arith.minsi %1, %c0_i32 : i32
    %c0_i32_0 = arith.constant 0 : i32
    %c0_i32_1 = arith.constant 0 : i32
    return %2, %c0_i32_0 : i32, i32
  }
  func.func @transform_1(%arg0: i32, %arg1: i32) -> (i32, i32) {
    %c1_i32 = arith.constant 1 : i32
    %0 = arith.muli %arg0, %c1_i32 : i32
    %1 = arith.addi %0, %arg1 : i32
    %c0_i32 = arith.constant 0 : i32
    %2 = arith.minsi %1, %c0_i32 : i32
    %c0_i32_0 = arith.constant 0 : i32
    %c0_i32_1 = arith.constant 0 : i32
    return %2, %c0_i32_0 : i32, i32
  }
  func.func @transform_2(%arg0: i32, %arg1: i32) -> (i32, i32) {
    %c0_i32 = arith.constant 0 : i32
    %c0_i32_0 = arith.constant 0 : i32
    %c0_i32_1 = arith.constant 0 : i32
    return %c0_i32, %c0_i32_0 : i32, i32
  }
  func.func @transform_3(%arg0: i32, %arg1: i32) -> (i32, i32) {
    %c0_i32 = arith.constant 0 : i32
    %c0_i32_0 = arith.constant 0 : i32
    %c0_i32_1 = arith.constant 0 : i32
    return %c0_i32, %c0_i32_0 : i32, i32
  }
  func.func @transform_4(%arg0: i32, %arg1: i32) -> (i32, i32) {
    %c0_i32 = arith.constant 0 : i32
    %c0_i32_0 = arith.constant 0 : i32
    %c0_i32_1 = arith.constant 0 : i32
    return %c0_i32, %c0_i32_0 : i32, i32
  }
  func.func @transform_5(%arg0: i32, %arg1: i32) -> (i32, i32) {
    %c0_i32 = arith.constant 0 : i32
    %c0_i32_0 = arith.constant 0 : i32
    %c0_i32_1 = arith.constant 0 : i32
    return %c0_i32, %c0_i32_0 : i32, i32
  }
  func.func @transform_6(%arg0: i32, %arg1: i32) -> (i32, i32) {
    %c0_i32 = arith.constant 0 : i32
    %c0_i32_0 = arith.constant 0 : i32
    %c0_i32_1 = arith.constant 0 : i32
    return %c0_i32, %c0_i32_0 : i32, i32
  }
  func.func @transform_7(%arg0: i32, %arg1: i32) -> (i32, i32) {
    %c0_i32 = arith.constant 0 : i32
    %c0_i32_0 = arith.constant 0 : i32
    %c0_i32_1 = arith.constant 0 : i32
    return %c0_i32, %c0_i32_0 : i32, i32
  }
  func.func @transform_8(%arg0: i32, %arg1: i32) -> (i32, i32, i32) {
    %c0_i32 = arith.constant 0 : i32
    %c0_i32_0 = arith.constant 0 : i32
    %c0_i32_1 = arith.constant 0 : i32
    return %arg0, %c0_i32, %c0_i32_0 : i32, i32, i32
  }
}

</mosaic_0001>

<llo_original>
// kernel: actor_loss.1
$region0: #{actor_loss.1}
  #allocation0 [shape = 'u32[]', space=smem, size = 0x4, offset = 0x4, fixed_abs, tag = 'smem constant byte address 0x4 - core index']
  #allocation1 [shape = 'u32[144,128]{1,0:T(1,128)}', space=vmem, size = 0x12000, scoped, tag = 'internal scratch']
  %s0 = inlined_call_operand.vmem [shape: f32[200,16], index: 0, kind: input, shape index: {}]
  %s1 = inlined_call_operand.vmem [shape: f32[200,8], index: 1, kind: input, shape index: {}]
  %s2 = inlined_call_operand.vmem [shape: f32[16,32], index: 2, kind: input, shape index: {}]
  %s3 = inlined_call_operand.vmem [shape: f32[8,32], index: 3, kind: input, shape index: {}]
  %s4 = inlined_call_operand.vmem [shape: f32[1,32], index: 4, kind: input, shape index: {}]
  %s5 = inlined_call_operand.vmem [shape: f32[32,32], index: 5, kind: input, shape index: {}]
  %s6 = inlined_call_operand.vmem [shape: f32[1,32], index: 6, kind: input, shape index: {}]
  %s7 = inlined_call_operand.vmem [shape: f32[1,32], index: 7, kind: input, shape index: {}]
  %s8 = inlined_call_operand.vmem [shape: f32[1,1,32], index: 8, kind: output, shape index: {}]
  %s9 = sld [smem:[#allocation0]]
  $region46: #{actor_loss.1} parent=0
    _
  %s11 = ssub.s32 1, %s9
  %s12 = scalar_select 0, %s11, %s9
  // Predicated region
  $region2: #{actor_loss.1} parent=0 // pred_check
    _
  $region3: #{actor_loss.1} parent=0 // pred_check_branch
    %14 = sbr.rel (0) target = $region5
  $region4: #{actor_loss.1} parent=0 // pred_region
    %s15 = sadd.s32 0, 0
    %p16 = scmp.lt.s32.totalorder %s15, 0
    %s17 = scalar_select %p16, %s15, 0
    %s18 = smul.u32 25, %s17
    %p19 = scmp.lt.s32.totalorder %s18, 24
    %s20 = scalar_select %p19, %s18, 24
    %s21 = smul.addr %s20, 8
    %s22 = scalar_lea.vmem %s0, %s21
    %s23 = sadd.s32 0, 0
    %p24 = scmp.lt.s32.totalorder %s23, 0
    %s25 = scalar_select %p24, %s23, 0
    %s26 = smul.u32 25, %s25
  $region5: #{actor_loss.1} parent=0 // pred_fallthru
    _
  // Predicated region
  $region6: #{actor_loss.1} parent=0 // pred_check
    _
  $region7: #{actor_loss.1} parent=0 // pred_check_branch
    %28 = sbr.rel (0) target = $region9
  $region8: #{actor_loss.1} parent=0 // pred_region
    %s29 = sadd.s32 0, 0
    %p30 = scmp.lt.s32.totalorder %s29, 0
    %s31 = scalar_select %p30, %s29, 0
    %s32 = smul.u32 25, %s31
    %p33 = scmp.lt.s32.totalorder %s32, 24
    %s34 = scalar_select %p33, %s32, 24
    %s35 = smul.addr %s34, 8
    %s36 = scalar_lea.vmem %s1, %s35
    %s37 = sadd.s32 0, 0
    %p38 = scmp.lt.s32.totalorder %s37, 0
    %s39 = scalar_select %p38, %s37, 0
    %s40 = smul.u32 25, %s39
  $region9: #{actor_loss.1} parent=0 // pred_fallthru
    _
  // Predicated region
  $region10: #{actor_loss.1} parent=0 // pred_check
    _
  $region11: #{actor_loss.1} parent=0 // pred_check_branch
    %42 = sbr.rel (0) target = $region13
  $region12: #{actor_loss.1} parent=0 // pred_region
    _
  $region13: #{actor_loss.1} parent=0 // pred_fallthru
    _
  // Predicated region
  $region14: #{actor_loss.1} parent=0 // pred_check
    _
  $region15: #{actor_loss.1} parent=0 // pred_check_branch
    %44 = sbr.rel (0) target = $region17
  $region16: #{actor_loss.1} parent=0 // pred_region
    _
  $region17: #{actor_loss.1} parent=0 // pred_fallthru
    _
  // Predicated region
  $region18: #{actor_loss.1} parent=0 // pred_check
    _
  $region19: #{actor_loss.1} parent=0 // pred_check_branch
    %46 = sbr.rel (0) target = $region21
  $region20: #{actor_loss.1} parent=0 // pred_region
    _
  $region21: #{actor_loss.1} parent=0 // pred_fallthru
    _
  // Predicated region
  $region22: #{actor_loss.1} parent=0 // pred_check
    _
  $region23: #{actor_loss.1} parent=0 // pred_check_branch
    %48 = sbr.rel (0) target = $region25
  $region24: #{actor_loss.1} parent=0 // pred_region
    _
  $region25: #{actor_loss.1} parent=0 // pred_fallthru
    _
  // Predicated region
  $region26: #{actor_loss.1} parent=0 // pred_check
    _
  $region27: #{actor_loss.1} parent=0 // pred_check_branch
    %50 = sbr.rel (0) target = $region29
  $region28: #{actor_loss.1} parent=0 // pred_region
    _
  $region29: #{actor_loss.1} parent=0 // pred_fallthru
    _
  // Predicated region
  $region30: #{actor_loss.1} parent=0 // pred_check
    _
  $region31: #{actor_loss.1} parent=0 // pred_check_branch
    %52 = sbr.rel (0) target = $region33
  $region32: #{actor_loss.1} parent=0 // pred_region
    _
  $region33: #{actor_loss.1} parent=0 // pred_fallthru
    _
  %s53 = sadd.s32 0, 0
  %p54 = scmp.lt.s32.totalorder %s53, 0
  %s55 = scalar_select %p54, %s53, 0
  %s56 = smul.u32 25, %s55
  %p57 = scmp.lt.s32.totalorder %s56, 24
  %s58 = scalar_select %p57, %s56, 24
  %s59 = smul.addr %s58, 8
  %s60 = scalar_lea.vmem %s0, %s59
  %s61 = sadd.s32 0, 0
  %p62 = scmp.lt.s32.totalorder %s61, 0
  %s63 = scalar_select %p62, %s61, 0
  %s64 = smul.u32 25, %s63
  %p65 = scmp.lt.s32.totalorder %s64, 24
  %s66 = scalar_select %p65, %s64, 24
  %s67 = smul.addr %s66, 8
  %s68 = scalar_lea.vmem %s1, %s67
  %s69 = sadd.s32 0, 0
  %p70 = scmp.lt.s32.totalorder %s69, 0
  %s71 = scalar_select %p70, %s69, 0
  %s72 = smul.u32 25, %s71
  %p73 = scmp.lt.s32.totalorder %s72, 24
  %s74 = scalar_select %p73, %s72, 24
  %s75 = smul.addr %s74, 8
  %s76 = scalar_lea.vmem %s0, %s75
  %s77 = sadd.s32 0, 0
  %p78 = scmp.lt.s32.totalorder %s77, 0
  %s79 = scalar_select %p78, %s77, 0
  %s80 = smul.u32 25, %s79
  %s81 = sadd.s32 0, 0
  %p82 = scmp.lt.s32.totalorder %s81, 0
  %s83 = scalar_select %p82, %s81, 0
  %s84 = smul.u32 25, %s83
  %p85 = scmp.lt.s32.totalorder %s84, 24
  %s86 = scalar_select %p85, %s84, 24
  %s87 = smul.addr %s86, 8
  %s88 = scalar_lea.vmem %s1, %s87
  %s89 = sadd.s32 0, 0
  %p90 = scmp.lt.s32.totalorder %s89, 0
  %s91 = scalar_select %p90, %s89, 0
  %s92 = smul.u32 25, %s91
  %p93 = scmp.eq.s32.totalorder 0, 0
  // Predicated region
  $region34: #{actor_loss.1} parent=0 // pred_check
    %p94 = pneg %p93
  $region35: #{actor_loss.1} parent=0 // pred_check_branch
    %96 = sbr.rel (%p94) target = $region37
  $region36: #{actor_loss.1} parent=0 // pred_region
    %vm97 = vcmask 253952
    %98 = vst.msk [vmem:[%s8] sm:$0x1] %vm97, 0.0
  $region37: #{actor_loss.1} parent=0 // pred_fallthru
    _
  %v99 = vld [vmem:[%s76] sm:$0xff]
  %v100 = vld [vmem:[%s76 + $0x8] sm:$0xff]
  %v101 = vld [vmem:[%s76 + $0x10] sm:$0xff]
  %v102 = vld [vmem:[%s76 + $0x18] sm:$0xff]
  %v103 = vld [vmem:[%s76 + $0x20] sm:$0xff]
  %v104 = vld [vmem:[%s76 + $0x28] sm:$0xff]
  %v105 = vld [vmem:[%s76 + $0x30] sm:$0xff]
  %v106 = vld [vmem:[%s76 + $0x38] sm:$0xff]
  %v107 = vld [vmem:[%s76 + $0x40] sm:$0xff]
  %v108 = vld [vmem:[%s76 + $0x48] sm:$0xff]
  %v109 = vld [vmem:[%s76 + $0x50] sm:$0xff]
  %v110 = vld [vmem:[%s76 + $0x58] sm:$0xff]
  %v111 = vld [vmem:[%s76 + $0x60] sm:$0xff]
  %v112 = vld [vmem:[%s76 + $0x68] sm:$0xff]
  %v113 = vld [vmem:[%s76 + $0x70] sm:$0xff]
  %v114 = vld [vmem:[%s76 + $0x78] sm:$0xff]
  %v115 = vld [vmem:[%s76 + $0x80] sm:$0xff]
  %v116 = vld [vmem:[%s76 + $0x88] sm:$0xff]
  %v117 = vld [vmem:[%s76 + $0x90] sm:$0xff]
  %v118 = vld [vmem:[%s76 + $0x98] sm:$0xff]
  %v119 = vld [vmem:[%s76 + $0xa0] sm:$0xff]
  %v120 = vld [vmem:[%s76 + $0xa8] sm:$0xff]
  %v121 = vld [vmem:[%s76 + $0xb0] sm:$0xff]
  %v122 = vld [vmem:[%s76 + $0xb8] sm:$0xff]
  %v123 = vld [vmem:[%s76 + $0xc0] sm:$0xff]
  %v124 = vld [vmem:[%s88] sm:$0xff]
  %v125 = vld [vmem:[%s88 + $0x8] sm:$0xff]
  %v126 = vld [vmem:[%s88 + $0x10] sm:$0xff]
  %v127 = vld [vmem:[%s88 + $0x18] sm:$0xff]
  %v128 = vld [vmem:[%s88 + $0x20] sm:$0xff]
  %v129 = vld [vmem:[%s88 + $0x28] sm:$0xff]
  %v130 = vld [vmem:[%s88 + $0x30] sm:$0xff]
  %v131 = vld [vmem:[%s88 + $0x38] sm:$0xff]
  %v132 = vld [vmem:[%s88 + $0x40] sm:$0xff]
  %v133 = vld [vmem:[%s88 + $0x48] sm:$0xff]
  %v134 = vld [vmem:[%s88 + $0x50] sm:$0xff]
  %v135 = vld [vmem:[%s88 + $0x58] sm:$0xff]
  %v136 = vld [vmem:[%s88 + $0x60] sm:$0xff]
  %v137 = vld [vmem:[%s88 + $0x68] sm:$0xff]
  %v138 = vld [vmem:[%s88 + $0x70] sm:$0xff]
  %v139 = vld [vmem:[%s88 + $0x78] sm:$0xff]
  %v140 = vld [vmem:[%s88 + $0x80] sm:$0xff]
  %v141 = vld [vmem:[%s88 + $0x88] sm:$0xff]
  %v142 = vld [vmem:[%s88 + $0x90] sm:$0xff]
  %v143 = vld [vmem:[%s88 + $0x98] sm:$0xff]
  %v144 = vld [vmem:[%s88 + $0xa0] sm:$0xff]
  %v145 = vld [vmem:[%s88 + $0xa8] sm:$0xff]
  %v146 = vld [vmem:[%s88 + $0xb0] sm:$0xff]
  %v147 = vld [vmem:[%s88 + $0xb8] sm:$0xff]
  %v148 = vld [vmem:[%s88 + $0xc0] sm:$0xff]
  %v149 = vld [vmem:[%s2] sm:$0xff]
  %v150 = vld [vmem:[%s2 + $0x8] sm:$0xff]
  %v151 = vld [vmem:[%s3] sm:$0xff]
  %vm152 = vcmask 64512
  %v154 = vsel %vm152, %v124, 0
  %v157 = vsel %vm152, %v125, 0
  %v160 = vsel %vm152, %v126, 0
  %v163 = vsel %vm152, %v127, 0
  %v166 = vsel %vm152, %v128, 0
  %v169 = vsel %vm152, %v129, 0
  %v172 = vsel %vm152, %v130, 0
  %v175 = vsel %vm152, %v131, 0
  %v178 = vsel %vm152, %v132, 0
  %v181 = vsel %vm152, %v133, 0
  %v184 = vsel %vm152, %v134, 0
  %v187 = vsel %vm152, %v135, 0
  %v190 = vsel %vm152, %v136, 0
  %v193 = vsel %vm152, %v137, 0
  %v196 = vsel %vm152, %v138, 0
  %v199 = vsel %vm152, %v139, 0
  %v202 = vsel %vm152, %v140, 0
  %v205 = vsel %vm152, %v141, 0
  %v208 = vsel %vm152, %v142, 0
  %v211 = vsel %vm152, %v143, 0
  %v214 = vsel %vm152, %v144, 0
  %v217 = vsel %vm152, %v145, 0
  %v220 = vsel %vm152, %v146, 0
  %v223 = vsel %vm152, %v147, 0
  %v226 = vsel %vm152, %v148, 0
  %228 = vmatprep.subr.mxu0 0.0
  %229 = vmatpush1.msra.mxu0 %v151
  %230 = vmatprep.subr.mxu0 0.0
  %231 = vmatpush1.msra.mxu0 0.0
  %232 = vmatprep.subr.mxu0 0.0
  %233 = vmatpush1.msra.mxu0 0.0
  %234 = vmatprep.subr.mxu0 0.0
  %235 = vmatpush1.msra.mxu0 0.0
  %236 = vmatprep.subr.mxu0 0.0
  %237 = vmatpush1.msra.mxu0 0.0
  %238 = vmatprep.subr.mxu0 0.0
  %239 = vmatpush1.msra.mxu0 0.0
  %240 = vmatprep.subr.mxu0 0.0
  %241 = vmatpush1.msra.mxu0 0.0
  %242 = vmatprep.subr.mxu0 0.0
  %243 = vmatpush1.msra.mxu0 0.0
  %244 = vmatprep.subr.mxu0 0.0
  %245 = vmatpush1.msra.mxu0 0.0
  %246 = vmatprep.subr.mxu0 0.0
  %247 = vmatpush1.msra.mxu0 0.0
  %248 = vmatprep.subr.mxu0 0.0
  %249 = vmatpush1.msra.mxu0 0.0
  %250 = vmatprep.subr.mxu0 0.0
  %251 = vmatpush1.msra.mxu0 0.0
  %252 = vmatprep.subr.mxu0 0.0
  %253 = vmatpush1.msra.mxu0 0.0
  %254 = vmatprep.subr.mxu0 0.0
  %255 = vmatpush1.msra.mxu0 0.0
  %256 = vmatprep.subr.mxu0 0.0
  %257 = vmatpush1.msra.mxu0 0.0
  %258 = vmatprep.subr.mxu0 0.0
  %259 = vmatpush1.msra.mxu0 0.0
  %260 = vmatprep.subr.mxu0 0.0
  %261 = vmatpush1.msra.mxu0 0.0
  %262 = vmatprep.subr.mxu0 0.0
  %263 = vmatpush1.msra.mxu0 0.0
  %264 = vmatprep.subr.mxu0 0.0
  %265 = vmatpush1.msra.mxu0 0.0
  %266 = vmatprep.subr.mxu0 0.0
  %267 = vmatpush1.msra.mxu0 0.0
  %268 = vmatprep.subr.mxu0 0.0
  %269 = vmatpush1.msra.mxu0 0.0
  %270 = vmatprep.subr.mxu0 0.0
  %271 = vmatpush1.msra.mxu0 0.0
  %272 = vmatprep.subr.mxu0 0.0
  %273 = vmatpush1.msra.mxu0 0.0
  %274 = vmatprep.subr.mxu0 0.0
  %275 = vmatpush1.msra.mxu0 0.0
  %276 = vmatprep.subr.mxu0 0.0
  %277 = vmatpush1.msra.mxu0 0.0
  %278 = vmatprep.subr.mxu0 0.0
  %279 = vmatpush1.msra.mxu0 0.0
  %280 = vmatprep.subr.mxu0 0.0
  %281 = vmatpush1.msra.mxu0 0.0
  %282 = vmatprep.subr.mxu0 0.0
  %283 = vmatpush1.msra.mxu0 0.0
  %284 = vmatprep.subr.mxu0 0.0
  %285 = vmatpush1.msra.mxu0 0.0
  %286 = vmatprep.subr.mxu0 0.0
  %287 = vmatpush1.msra.mxu0 0.0
  %288 = vmatprep.subr.mxu0 0.0
  %289 = vmatpush1.msra.mxu0 0.0
  %290 = vmatprep.subr.mxu0 0.0
  %291 = vmatpush1.msra.mxu0 0.0
  %292 = vmatprep.mubr.f32.mxu0 0.0
  %293 = vmatmul.mubr.f32.gmra.mrb[0].mxu0 %v154
  %v294 = vpop.f32.mrb[0].mxu0
  %v295 = vadd.f32 0.0, %v294
  %v296 = vpop.f32.mrb[0].mxu0
  %297 = vmatprep.mubr.f32.mxu0 0.0
  %298 = vmatmul.mubr.f32.gmra.mrb[0].mxu0 %v157
  %v299 = vpop.f32.mrb[0].mxu0
  %v300 = vadd.f32 0.0, %v299
  %v301 = vpop.f32.mrb[0].mxu0
  %302 = vmatprep.mubr.f32.mxu0 0.0
  %303 = vmatmul.mubr.f32.gmra.mrb[0].mxu0 %v160
  %v304 = vpop.f32.mrb[0].mxu0
  %v305 = vadd.f32 0.0, %v304
  %v306 = vpop.f32.mrb[0].mxu0
  %307 = vmatprep.mubr.f32.mxu0 0.0
  %308 = vmatmul.mubr.f32.gmra.mrb[0].mxu0 %v163
  %v309 = vpop.f32.mrb[0].mxu0
  %v310 = vadd.f32 0.0, %v309
  %v311 = vpop.f32.mrb[0].mxu0
  %312 = vmatprep.mubr.f32.mxu0 0.0
  %313 = vmatmul.mubr.f32.gmra.mrb[0].mxu0 %v166
  %v314 = vpop.f32.mrb[0].mxu0
  %v315 = vadd.f32 0.0, %v314
  %v316 = vpop.f32.mrb[0].mxu0
  %317 = vmatprep.mubr.f32.mxu0 0.0
  %318 = vmatmul.mubr.f32.gmra.mrb[0].mxu0 %v169
  %v319 = vpop.f32.mrb[0].mxu0
  %v320 = vadd.f32 0.0, %v319
  %v321 = vpop.f32.mrb[0].mxu0
  %322 = vmatprep.mubr.f32.mxu0 0.0
  %323 = vmatmul.mubr.f32.gmra.mrb[0].mxu0 %v172
  %v324 = vpop.f32.mrb[0].mxu0
  %v325 = vadd.f32 0.0, %v324
  %v326 = vpop.f32.mrb[0].mxu0
  %327 = vmatprep.mubr.f32.mxu0 0.0
  %328 = vmatmul.mubr.f32.gmra.mrb[0].mxu0 %v175
  %v329 = vpop.f32.mrb[0].mxu0
  %v330 = vadd.f32 0.0, %v329
  %v331 = vpop.f32.mrb[0].mxu0
  %332 = vmatprep.mubr.f32.mxu0 0.0
  %333 = vmatmul.mubr.f32.gmra.mrb[0].mxu0 %v178
  %v334 = vpop.f32.mrb[0].mxu0
  %v335 = vadd.f32 0.0, %v334
  %v336 = vpop.f32.mrb[0].mxu0
  %337 = vmatprep.mubr.f32.mxu0 0.0
  %338 = vmatmul.mubr.f32.gmra.mrb[0].mxu0 %v181
  %v339 = vpop.f32.mrb[0].mxu0
  %v340 = vadd.f32 0.0, %v339
  %v341 = vpop.f32.mrb[0].mxu0
  %342 = vmatprep.mubr.f32.mxu0 0.0
  %343 = vmatmul.mubr.f32.gmra.mrb[0].mxu0 %v184
  %v344 = vpop.f32.mrb[0].mxu0
  %v345 = vadd.f32 0.0, %v344
  %v346 = vpop.f32.mrb[0].mxu0
  %347 = vmatprep.mubr.f32.mxu0 0.0
  %348 = vmatmul.mubr.f32.gmra.mrb[0].mxu0 %v187
  %v349 = vpop.f32.mrb[0].mxu0
  %v350 = vadd.f32 0.0, %v349
  %v351 = vpop.f32.mrb[0].mxu0
  %352 = vmatprep.mubr.f32.mxu0 0.0
  %353 = vmatmul.mubr.f32.gmra.mrb[0].mxu0 %v190
  %v354 = vpop.f32.mrb[0].mxu0
  %v355 = vadd.f32 0.0, %v354
  %v356 = vpop.f32.mrb[0].mxu0
  %357 = vmatprep.mubr.f32.mxu0 0.0
  %358 = vmatmul.mubr.f32.gmra.mrb[0].mxu0 %v193
  %v359 = vpop.f32.mrb[0].mxu0
  %v360 = vadd.f32 0.0, %v359
  %v361 = vpop.f32.mrb[0].mxu0
  %362 = vmatprep.mubr.f32.mxu0 0.0
  %363 = vmatmul.mubr.f32.gmra.mrb[0].mxu0 %v196
  %v364 = vpop.f32.mrb[0].mxu0
  %v365 = vadd.f32 0.0, %v364
  %v366 = vpop.f32.mrb[0].mxu0
  %367 = vmatprep.mubr.f32.mxu0 0.0
  %368 = vmatmul.mubr.f32.gmra.mrb[0].mxu0 %v199
  %v369 = vpop.f32.mrb[0].mxu0
  %v370 = vadd.f32 0.0, %v369
  %v371 = vpop.f32.mrb[0].mxu0
  %372 = vmatprep.mubr.f32.mxu0 0.0
  %373 = vmatmul.mubr.f32.gmra.mrb[0].mxu0 %v202
  %v374 = vpop.f32.mrb[0].mxu0
  %v375 = vadd.f32 0.0, %v374
  %v376 = vpop.f32.mrb[0].mxu0
  %377 = vmatprep.mubr.f32.mxu0 0.0
  %378 = vmatmul.mubr.f32.gmra.mrb[0].mxu0 %v205
  %v379 = vpop.f32.mrb[0].mxu0
  %v380 = vadd.f32 0.0, %v379
  %v381 = vpop.f32.mrb[0].mxu0
  %382 = vmatprep.mubr.f32.mxu0 0.0
  %383 = vmatmul.mubr.f32.gmra.mrb[0].mxu0 %v208
  %v384 = vpop.f32.mrb[0].mxu0
  %v385 = vadd.f32 0.0, %v384
  %v386 = vpop.f32.mrb[0].mxu0
  %387 = vmatprep.mubr.f32.mxu0 0.0
  %388 = vmatmul.mubr.f32.gmra.mrb[0].mxu0 %v211
  %v389 = vpop.f32.mrb[0].mxu0
  %v390 = vadd.f32 0.0, %v389
  %v391 = vpop.f32.mrb[0].mxu0
  %392 = vmatprep.mubr.f32.mxu0 0.0
  %393 = vmatmul.mubr.f32.gmra.mrb[0].mxu0 %v214
  %v394 = vpop.f32.mrb[0].mxu0
  %v395 = vadd.f32 0.0, %v394
  %v396 = vpop.f32.mrb[0].mxu0
  %397 = vmatprep.mubr.f32.mxu0 0.0
  %398 = vmatmul.mubr.f32.gmra.mrb[0].mxu0 %v217
  %v399 = vpop.f32.mrb[0].mxu0
  %v400 = vadd.f32 0.0, %v399
  %v401 = vpop.f32.mrb[0].mxu0
  %402 = vmatprep.mubr.f32.mxu0 0.0
  %403 = vmatmul.mubr.f32.gmra.mrb[0].mxu0 %v220
  %v404 = vpop.f32.mrb[0].mxu0
  %v405 = vadd.f32 0.0, %v404
  %v406 = vpop.f32.mrb[0].mxu0
  %407 = vmatprep.mubr.f32.mxu0 0.0
  %408 = vmatmul.mubr.f32.gmra.mrb[0].mxu0 %v223
  %v409 = vpop.f32.mrb[0].mxu0
  %v410 = vadd.f32 0.0, %v409
  %v411 = vpop.f32.mrb[0].mxu0
  %412 = vmatprep.mubr.f32.mxu0 0.0
  %413 = vmatmul.mubr.f32.gmra.mrb[0].mxu0 %v226
  %v414 = vpop.f32.mrb[0].mxu0
  %v415 = vadd.f32 0.0, %v414
  %v416 = vpop.f32.mrb[0].mxu0
  %417 = vdwg.mxu0
  %vm418 = vcmask 130048
  %v420 = vsel %vm418, %v99, 0
  %v423 = vsel %vm418, %v100, 0
  %v426 = vsel %vm418, %v101, 0
  %v429 = vsel %vm418, %v102, 0
  %v432 = vsel %vm418, %v103, 0
  %v435 = vsel %vm418, %v104, 0
  %v438 = vsel %vm418, %v105, 0
  %v441 = vsel %vm418, %v106, 0
  %v444 = vsel %vm418, %v107, 0
  %v447 = vsel %vm418, %v108, 0
  %v450 = vsel %vm418, %v109, 0
  %v453 = vsel %vm418, %v110, 0
  %v456 = vsel %vm418, %v111, 0
  %v459 = vsel %vm418, %v112, 0
  %v462 = vsel %vm418, %v113, 0
  %v465 = vsel %vm418, %v114, 0
  %v468 = vsel %vm418, %v115, 0
  %v471 = vsel %vm418, %v116, 0
  %v474 = vsel %vm418, %v117, 0
  %v477 = vsel %vm418, %v118, 0
  %v480 = vsel %vm418, %v119, 0
  %v483 = vsel %vm418, %v120, 0
  %v486 = vsel %vm418, %v121, 0
  %v489 = vsel %vm418, %v122, 0
  %v492 = vsel %vm418, %v123, 0
  %494 = vmatprep.subr.mxu0 0.0
  %495 = vmatpush1.msra.mxu0 %v149
  %496 = vmatprep.subr.mxu0 0.0
  %497 = vmatpush1.msra.mxu0 %v150
  %498 = vmatprep.subr.mxu0 0.0
  %499 = vmatpush1.msra.mxu0 0.0
  %500 = vmatprep.subr.mxu0 0.0
  %501 = vmatpush1.msra.mxu0 0.0
  %502 = vmatprep.subr.mxu0 0.0
  %503 = vmatpush1.msra.mxu0 0.0
  %504 = vmatprep.subr.mxu0 0.0
  %505 = vmatpush1.msra.mxu0 0.0
  %506 = vmatprep.subr.mxu0 0.0
  %507 = vmatpush1.msra.mxu0 0.0
  %508 = vmatprep.subr.mxu0 0.0
  %509 = vmatpush1.msra.mxu0 0.0
  %510 = vmatprep.subr.mxu0 0.0
  %511 = vmatpush1.msra.mxu0 0.0
  %512 = vmatprep.subr.mxu0 0.0
  %513 = vmatpush1.msra.mxu0 0.0
  %514 = vmatprep.subr.mxu0 0.0
  %515 = vmatpush1.msra.mxu0 0.0
  %516 = vmatprep.subr.mxu0 0.0
  %517 = vmatpush1.msra.mxu0 0.0
  %518 = vmatprep.subr.mxu0 0.0
  %519 = vmatpush1.msra.mxu0 0.0
  %520 = vmatprep.subr.mxu0 0.0
  %521 = vmatpush1.msra.mxu0 0.0
  %522 = vmatprep.subr.mxu0 0.0
  %523 = vmatpush1.msra.mxu0 0.0
  %524 = vmatprep.subr.mxu0 0.0
  %525 = vmatpush1.msra.mxu0 0.0
  %526 = vmatprep.subr.mxu0 0.0
  %527 = vmatpush1.msra.mxu0 0.0
  %528 = vmatprep.subr.mxu0 0.0
  %529 = vmatpush1.msra.mxu0 0.0
  %530 = vmatprep.subr.mxu0 0.0
  %531 = vmatpush1.msra.mxu0 0.0
  %532 = vmatprep.subr.mxu0 0.0
  %533 = vmatpush1.msra.mxu0 0.0
  %534 = vmatprep.subr.mxu0 0.0
  %535 = vmatpush1.msra.mxu0 0.0
  %536 = vmatprep.subr.mxu0 0.0
  %537 = vmatpush1.msra.mxu0 0.0
  %538 = vmatprep.subr.mxu0 0.0
  %539 = vmatpush1.msra.mxu0 0.0
  %540 = vmatprep.subr.mxu0 0.0
  %541 = vmatpush1.msra.mxu0 0.0
  %542 = vmatprep.subr.mxu0 0.0
  %543 = vmatpush1.msra.mxu0 0.0
  %544 = vmatprep.subr.mxu0 0.0
  %545 = vmatpush1.msra.mxu0 0.0
  %546 = vmatprep.subr.mxu0 0.0
  %547 = vmatpush1.msra.mxu0 0.0
  %548 = vmatprep.subr.mxu0 0.0
  %549 = vmatpush1.msra.mxu0 0.0
  %550 = vmatprep.subr.mxu0 0.0
  %551 = vmatpush1.msra.mxu0 0.0
  %552 = vmatprep.subr.mxu0 0.0
  %553 = vmatpush1.msra.mxu0 0.0
  %554 = vmatprep.subr.mxu0 0.0
  %555 = vmatpush1.msra.mxu0 0.0
  %556 = vmatprep.subr.mxu0 0.0
  %557 = vmatpush1.msra.mxu0 0.0
  %558 = vmatprep.mubr.f32.mxu0 0.0
  %559 = vmatmul.mubr.f32.gmra.mrb[0].mxu0 %v420
  %v560 = vpop.f32.mrb[0].mxu0
  %v561 = vadd.f32 %v295, %v560
  %v562 = vpop.f32.mrb[0].mxu0
  %563 = vmatprep.mubr.f32.mxu0 0.0
  %564 = vmatmul.mubr.f32.gmra.mrb[0].mxu0 %v423
  %v565 = vpop.f32.mrb[0].mxu0
  %v566 = vadd.f32 %v300, %v565
  %v567 = vpop.f32.mrb[0].mxu0
  %568 = vmatprep.mubr.f32.mxu0 0.0
  %569 = vmatmul.mubr.f32.gmra.mrb[0].mxu0 %v426
  %v570 = vpop.f32.mrb[0].mxu0
  %v571 = vadd.f32 %v305, %v570
  %v572 = vpop.f32.mrb[0].mxu0
  %573 = vmatprep.mubr.f32.mxu0 0.0
  %574 = vmatmul.mubr.f32.gmra.mrb[0].mxu0 %v429
  %v575 = vpop.f32.mrb[0].mxu0
  %v576 = vadd.f32 %v310, %v575
  %v577 = vpop.f32.mrb[0].mxu0
  %578 = vmatprep.mubr.f32.mxu0 0.0
  %579 = vmatmul.mubr.f32.gmra.mrb[0].mxu0 %v432
  %v580 = vpop.f32.mrb[0].mxu0
  %v581 = vadd.f32 %v315, %v580
  %v582 = vpop.f32.mrb[0].mxu0
  %583 = vmatprep.mubr.f32.mxu0 0.0
  %584 = vmatmul.mubr.f32.gmra.mrb[0].mxu0 %v435
  %v585 = vpop.f32.mrb[0].mxu0
  %v586 = vadd.f32 %v320, %v585
  %v587 = vpop.f32.mrb[0].mxu0
  %588 = vmatprep.mubr.f32.mxu0 0.0
  %589 = vmatmul.mubr.f32.gmra.mrb[0].mxu0 %v438
  %v590 = vpop.f32.mrb[0].mxu0
  %v591 = vadd.f32 %v325, %v590
  %v592 = vpop.f32.mrb[0].mxu0
  %593 = vmatprep.mubr.f32.mxu0 0.0
  %594 = vmatmul.mubr.f32.gmra.mrb[0].mxu0 %v441
  %v595 = vpop.f32.mrb[0].mxu0
  %v596 = vadd.f32 %v330, %v595
  %v597 = vpop.f32.mrb[0].mxu0
  %598 = vmatprep.mubr.f32.mxu0 0.0
  %599 = vmatmul.mubr.f32.gmra.mrb[0].mxu0 %v444
  %v600 = vpop.f32.mrb[0].mxu0
  %v601 = vadd.f32 %v335, %v600
  %v602 = vpop.f32.mrb[0].mxu0
  %603 = vmatprep.mubr.f32.mxu0 0.0
  %604 = vmatmul.mubr.f32.gmra.mrb[0].mxu0 %v447
  %v605 = vpop.f32.mrb[0].mxu0
  %v606 = vadd.f32 %v340, %v605
  %v607 = vpop.f32.mrb[0].mxu0
  %608 = vmatprep.mubr.f32.mxu0 0.0
  %609 = vmatmul.mubr.f32.gmra.mrb[0].mxu0 %v450
  %v610 = vpop.f32.mrb[0].mxu0
  %v611 = vadd.f32 %v345, %v610
  %v612 = vpop.f32.mrb[0].mxu0
  %613 = vmatprep.mubr.f32.mxu0 0.0
  %614 = vmatmul.mubr.f32.gmra.mrb[0].mxu0 %v453
  %v615 = vpop.f32.mrb[0].mxu0
  %v616 = vadd.f32 %v350, %v615
  %v617 = vpop.f32.mrb[0].mxu0
  %618 = vmatprep.mubr.f32.mxu0 0.0
  %619 = vmatmul.mubr.f32.gmra.mrb[0].mxu0 %v456
  %v620 = vpop.f32.mrb[0].mxu0
  %v621 = vadd.f32 %v355, %v620
  %v622 = vpop.f32.mrb[0].mxu0
  %623 = vmatprep.mubr.f32.mxu0 0.0
  %624 = vmatmul.mubr.f32.gmra.mrb[0].mxu0 %v459
  %v625 = vpop.f32.mrb[0].mxu0
  %v626 = vadd.f32 %v360, %v625
  %v627 = vpop.f32.mrb[0].mxu0
  %628 = vmatprep.mubr.f32.mxu0 0.0
  %629 = vmatmul.mubr.f32.gmra.mrb[0].mxu0 %v462
  %v630 = vpop.f32.mrb[0].mxu0
  %v631 = vadd.f32 %v365, %v630
  %v632 = vpop.f32.mrb[0].mxu0
  %633 = vmatprep.mubr.f32.mxu0 0.0
  %634 = vmatmul.mubr.f32.gmra.mrb[0].mxu0 %v465
  %v635 = vpop.f32.mrb[0].mxu0
  %v636 = vadd.f32 %v370, %v635
  %v637 = vpop.f32.mrb[0].mxu0
  %638 = vmatprep.mubr.f32.mxu0 0.0
  %639 = vmatmul.mubr.f32.gmra.mrb[0].mxu0 %v468
  %v640 = vpop.f32.mrb[0].mxu0
  %v641 = vadd.f32 %v375, %v640
  %v642 = vpop.f32.mrb[0].mxu0
  %643 = vmatprep.mubr.f32.mxu0 0.0
  %644 = vmatmul.mubr.f32.gmra.mrb[0].mxu0 %v471
  %v645 = vpop.f32.mrb[0].mxu0
  %v646 = vadd.f32 %v380, %v645
  %v647 = vpop.f32.mrb[0].mxu0
  %648 = vmatprep.mubr.f32.mxu0 0.0
  %649 = vmatmul.mubr.f32.gmra.mrb[0].mxu0 %v474
  %v650 = vpop.f32.mrb[0].mxu0
  %v651 = vadd.f32 %v385, %v650
  %v652 = vpop.f32.mrb[0].mxu0
  %653 = vmatprep.mubr.f32.mxu0 0.0
  %654 = vmatmul.mubr.f32.gmra.mrb[0].mxu0 %v477
  %v655 = vpop.f32.mrb[0].mxu0
  %v656 = vadd.f32 %v390, %v655
  %v657 = vpop.f32.mrb[0].mxu0
  %658 = vmatprep.mubr.f32.mxu0 0.0
  %659 = vmatmul.mubr.f32.gmra.mrb[0].mxu0 %v480
  %v660 = vpop.f32.mrb[0].mxu0
  %v661 = vadd.f32 %v395, %v660
  %v662 = vpop.f32.mrb[0].mxu0
  %663 = vmatprep.mubr.f32.mxu0 0.0
  %664 = vmatmul.mubr.f32.gmra.mrb[0].mxu0 %v483
  %v665 = vpop.f32.mrb[0].mxu0
  %v666 = vadd.f32 %v400, %v665
  %v667 = vpop.f32.mrb[0].mxu0
  %668 = vmatprep.mubr.f32.mxu0 0.0
  %669 = vmatmul.mubr.f32.gmra.mrb[0].mxu0 %v486
  %v670 = vpop.f32.mrb[0].mxu0
  %v671 = vadd.f32 %v405, %v670
  %v672 = vpop.f32.mrb[0].mxu0
  %673 = vmatprep.mubr.f32.mxu0 0.0
  %674 = vmatmul.mubr.f32.gmra.mrb[0].mxu0 %v489
  %v675 = vpop.f32.mrb[0].mxu0
  %v676 = vadd.f32 %v410, %v675
  %v677 = vpop.f32.mrb[0].mxu0
  %678 = vmatprep.mubr.f32.mxu0 0.0
  %679 = vmatmul.mubr.f32.gmra.mrb[0].mxu0 %v492
  %v680 = vpop.f32.mrb[0].mxu0
  %v681 = vadd.f32 %v415, %v680
  %v682 = vpop.f32.mrb[0].mxu0
  %683 = vdwg.mxu0
  %v684 = vld [vmem:[%s4] sm:$0x1]
  %v686 = vlaneseq
  %v687 = vshrl.u32 %v686, 7
  %v688 = vsub.s32 0, %v687
  %v689 = vrot.slane %v684, %v688
  %v691 = vadd.f32 %v561, %v689
  %v692 = vadd.f32 %v566, %v689
  %v693 = vadd.f32 %v571, %v689
  %v694 = vadd.f32 %v576, %v689
  %v695 = vadd.f32 %v581, %v689
  %v696 = vadd.f32 %v586, %v689
  %v697 = vadd.f32 %v591, %v689
  %v698 = vadd.f32 %v596, %v689
  %v699 = vadd.f32 %v601, %v689
  %v700 = vadd.f32 %v606, %v689
  %v701 = vadd.f32 %v611, %v689
  %v702 = vadd.f32 %v616, %v689
  %v703 = vadd.f32 %v621, %v689
  %v704 = vadd.f32 %v626, %v689
  %v705 = vadd.f32 %v631, %v689
  %v706 = vadd.f32 %v636, %v689
  %v707 = vadd.f32 %v641, %v689
  %v708 = vadd.f32 %v646, %v689
  %v709 = vadd.f32 %v651, %v689
  %v710 = vadd.f32 %v656, %v689
  %v711 = vadd.f32 %v661, %v689
  %v712 = vadd.f32 %v666, %v689
  %v713 = vadd.f32 %v671, %v689
  %v714 = vadd.f32 %v676, %v689
  %v715 = vadd.f32 %v681, %v689
  %v716 = vmax.f32 %v691, 0.0
  %v717 = vmax.f32 %v692, 0.0
  %v718 = vmax.f32 %v693, 0.0
  %v719 = vmax.f32 %v694, 0.0
  %v720 = vmax.f32 %v695, 0.0
  %v721 = vmax.f32 %v696, 0.0
  %v722 = vmax.f32 %v697, 0.0
  %v723 = vmax.f32 %v698, 0.0
  %v724 = vmax.f32 %v699, 0.0
  %v725 = vmax.f32 %v700, 0.0
  %v726 = vmax.f32 %v701, 0.0
  %v727 = vmax.f32 %v702, 0.0
  %v728 = vmax.f32 %v703, 0.0
  %v729 = vmax.f32 %v704, 0.0
  %v730 = vmax.f32 %v705, 0.0
  %v731 = vmax.f32 %v706, 0.0
  %v732 = vmax.f32 %v707, 0.0
  %v733 = vmax.f32 %v708, 0.0
  %v734 = vmax.f32 %v709, 0.0
  %v735 = vmax.f32 %v710, 0.0
  %v736 = vmax.f32 %v711, 0.0
  %v737 = vmax.f32 %v712, 0.0
  %v738 = vmax.f32 %v713, 0.0
  %v739 = vmax.f32 %v714, 0.0
  %v740 = vmax.f32 %v715, 0.0
  %v741 = vld [vmem:[%s5] sm:$0xff]
  %v742 = vld [vmem:[%s5 + $0x8] sm:$0xff]
  %v743 = vld [vmem:[%s5 + $0x10] sm:$0xff]
  %v744 = vld [vmem:[%s5 + $0x18] sm:$0xff]
  %v745 = vld [vmem:[%s6] sm:$0x1]
  %v747 = vlaneseq
  %v748 = vshrl.u32 %v747, 7
  %v749 = vsub.s32 0, %v748
  %v750 = vrot.slane %v745, %v749
  %vm752 = vcmask 261120
  %v754 = vsel %vm752, %v716, 0
  %v757 = vsel %vm752, %v717, 0
  %v760 = vsel %vm752, %v718, 0
  %v763 = vsel %vm752, %v719, 0
  %v766 = vsel %vm752, %v720, 0
  %v769 = vsel %vm752, %v721, 0
  %v772 = vsel %vm752, %v722, 0
  %v775 = vsel %vm752, %v723, 0
  %v778 = vsel %vm752, %v724, 0
  %v781 = vsel %vm752, %v725, 0
  %v784 = vsel %vm752, %v726, 0
  %v787 = vsel %vm752, %v727, 0
  %v790 = vsel %vm752, %v728, 0
  %v793 = vsel %vm752, %v729, 0
  %v796 = vsel %vm752, %v730, 0
  %v799 = vsel %vm752, %v731, 0
  %v802 = vsel %vm752, %v732, 0
  %v805 = vsel %vm752, %v733, 0
  %v808 = vsel %vm752, %v734, 0
  %v811 = vsel %vm752, %v735, 0
  %v814 = vsel %vm752, %v736, 0
  %v817 = vsel %vm752, %v737, 0
  %v820 = vsel %vm752, %v738, 0
  %v823 = vsel %vm752, %v739, 0
  %v826 = vsel %vm752, %v740, 0
  %828 = vmatprep.subr.mxu0 0.0
  %829 = vmatpush1.msra.mxu0 %v741
  %830 = vmatprep.subr.mxu0 0.0
  %831 = vmatpush1.msra.mxu0 %v742
  %832 = vmatprep.subr.mxu0 0.0
  %833 = vmatpush1.msra.mxu0 %v743
  %834 = vmatprep.subr.mxu0 0.0
  %835 = vmatpush1.msra.mxu0 %v744
  %836 = vmatprep.subr.mxu0 0.0
  %837 = vmatpush1.msra.mxu0 0.0
  %838 = vmatprep.subr.mxu0 0.0
  %839 = vmatpush1.msra.mxu0 0.0
  %840 = vmatprep.subr.mxu0 0.0
  %841 = vmatpush1.msra.mxu0 0.0
  %842 = vmatprep.subr.mxu0 0.0
  %843 = vmatpush1.msra.mxu0 0.0
  %844 = vmatprep.subr.mxu0 0.0
  %845 = vmatpush1.msra.mxu0 0.0
  %846 = vmatprep.subr.mxu0 0.0
  %847 = vmatpush1.msra.mxu0 0.0
  %848 = vmatprep.subr.mxu0 0.0
  %849 = vmatpush1.msra.mxu0 0.0
  %850 = vmatprep.subr.mxu0 0.0
  %851 = vmatpush1.msra.mxu0 0.0
  %852 = vmatprep.subr.mxu0 0.0
  %853 = vmatpush1.msra.mxu0 0.0
  %854 = vmatprep.subr.mxu0 0.0
  %855 = vmatpush1.msra.mxu0 0.0
  %856 = vmatprep.subr.mxu0 0.0
  %857 = vmatpush1.msra.mxu0 0.0
  %858 = vmatprep.subr.mxu0 0.0
  %859 = vmatpush1.msra.mxu0 0.0
  %860 = vmatprep.subr.mxu0 0.0
  %861 = vmatpush1.msra.mxu0 0.0
  %862 = vmatprep.subr.mxu0 0.0
  %863 = vmatpush1.msra.mxu0 0.0
  %864 = vmatprep.subr.mxu0 0.0
  %865 = vmatpush1.msra.mxu0 0.0
  %866 = vmatprep.subr.mxu0 0.0
  %867 = vmatpush1.msra.mxu0 0.0
  %868 = vmatprep.subr.mxu0 0.0
  %869 = vmatpush1.msra.mxu0 0.0
  %870 = vmatprep.subr.mxu0 0.0
  %871 = vmatpush1.msra.mxu0 0.0
  %872 = vmatprep.subr.mxu0 0.0
  %873 = vmatpush1.msra.mxu0 0.0
  %874 = vmatprep.subr.mxu0 0.0
  %875 = vmatpush1.msra.mxu0 0.0
  %876 = vmatprep.subr.mxu0 0.0
  %877 = vmatpush1.msra.mxu0 0.0
  %878 = vmatprep.subr.mxu0 0.0
  %879 = vmatpush1.msra.mxu0 0.0
  %880 = vmatprep.subr.mxu0 0.0
  %881 = vmatpush1.msra.mxu0 0.0
  %882 = vmatprep.subr.mxu0 0.0
  %883 = vmatpush1.msra.mxu0 0.0
  %884 = vmatprep.subr.mxu0 0.0
  %885 = vmatpush1.msra.mxu0 0.0
  %886 = vmatprep.subr.mxu0 0.0
  %887 = vmatpush1.msra.mxu0 0.0
  %888 = vmatprep.subr.mxu0 0.0
  %889 = vmatpush1.msra.mxu0 0.0
  %890 = vmatprep.subr.mxu0 0.0
  %891 = vmatpush1.msra.mxu0 0.0
  %892 = vmatprep.mubr.f32.mxu0 0.0
  %893 = vmatmul.mubr.f32.gmra.mrb[0].mxu0 %v754
  %v894 = vpop.f32.mrb[0].mxu0
  %v895 = vadd.f32 %v750, %v894
  %v896 = vpop.f32.mrb[0].mxu0
  %897 = vmatprep.mubr.f32.mxu0 0.0
  %898 = vmatmul.mubr.f32.gmra.mrb[0].mxu0 %v757
  %v899 = vpop.f32.mrb[0].mxu0
  %v900 = vadd.f32 %v750, %v899
  %v901 = vpop.f32.mrb[0].mxu0
  %902 = vmatprep.mubr.f32.mxu0 0.0
  %903 = vmatmul.mubr.f32.gmra.mrb[0].mxu0 %v760
  %v904 = vpop.f32.mrb[0].mxu0
  %v905 = vadd.f32 %v750, %v904
  %v906 = vpop.f32.mrb[0].mxu0
  %907 = vmatprep.mubr.f32.mxu0 0.0
  %908 = vmatmul.mubr.f32.gmra.mrb[0].mxu0 %v763
  %v909 = vpop.f32.mrb[0].mxu0
  %v910 = vadd.f32 %v750, %v909
  %v911 = vpop.f32.mrb[0].mxu0
  %912 = vmatprep.mubr.f32.mxu0 0.0
  %913 = vmatmul.mubr.f32.gmra.mrb[0].mxu0 %v766
  %v914 = vpop.f32.mrb[0].mxu0
  %v915 = vadd.f32 %v750, %v914
  %v916 = vpop.f32.mrb[0].mxu0
  %917 = vmatprep.mubr.f32.mxu0 0.0
  %918 = vmatmul.mubr.f32.gmra.mrb[0].mxu0 %v769
  %v919 = vpop.f32.mrb[0].mxu0
  %v920 = vadd.f32 %v750, %v919
  %v921 = vpop.f32.mrb[0].mxu0
  %922 = vmatprep.mubr.f32.mxu0 0.0
  %923 = vmatmul.mubr.f32.gmra.mrb[0].mxu0 %v772
  %v924 = vpop.f32.mrb[0].mxu0
  %v925 = vadd.f32 %v750, %v924
  %v926 = vpop.f32.mrb[0].mxu0
  %927 = vmatprep.mubr.f32.mxu0 0.0
  %928 = vmatmul.mubr.f32.gmra.mrb[0].mxu0 %v775
  %v929 = vpop.f32.mrb[0].mxu0
  %v930 = vadd.f32 %v750, %v929
  %v931 = vpop.f32.mrb[0].mxu0
  %932 = vmatprep.mubr.f32.mxu0 0.0
  %933 = vmatmul.mubr.f32.gmra.mrb[0].mxu0 %v778
  %v934 = vpop.f32.mrb[0].mxu0
  %v935 = vadd.f32 %v750, %v934
  %v936 = vpop.f32.mrb[0].mxu0
  %937 = vmatprep.mubr.f32.mxu0 0.0
  %938 = vmatmul.mubr.f32.gmra.mrb[0].mxu0 %v781
  %v939 = vpop.f32.mrb[0].mxu0
  %v940 = vadd.f32 %v750, %v939
  %v941 = vpop.f32.mrb[0].mxu0
  %942 = vmatprep.mubr.f32.mxu0 0.0
  %943 = vmatmul.mubr.f32.gmra.mrb[0].mxu0 %v784
  %v944 = vpop.f32.mrb[0].mxu0
  %v945 = vadd.f32 %v750, %v944
  %v946 = vpop.f32.mrb[0].mxu0
  %947 = vmatprep.mubr.f32.mxu0 0.0
  %948 = vmatmul.mubr.f32.gmra.mrb[0].mxu0 %v787
  %v949 = vpop.f32.mrb[0].mxu0
  %v950 = vadd.f32 %v750, %v949
  %v951 = vpop.f32.mrb[0].mxu0
  %952 = vmatprep.mubr.f32.mxu0 0.0
  %953 = vmatmul.mubr.f32.gmra.mrb[0].mxu0 %v790
  %v954 = vpop.f32.mrb[0].mxu0
  %v955 = vadd.f32 %v750, %v954
  %v956 = vpop.f32.mrb[0].mxu0
  %957 = vmatprep.mubr.f32.mxu0 0.0
  %958 = vmatmul.mubr.f32.gmra.mrb[0].mxu0 %v793
  %v959 = vpop.f32.mrb[0].mxu0
  %v960 = vadd.f32 %v750, %v959
  %v961 = vpop.f32.mrb[0].mxu0
  %962 = vmatprep.mubr.f32.mxu0 0.0
  %963 = vmatmul.mubr.f32.gmra.mrb[0].mxu0 %v796
  %v964 = vpop.f32.mrb[0].mxu0
  %v965 = vadd.f32 %v750, %v964
  %v966 = vpop.f32.mrb[0].mxu0
  %967 = vmatprep.mubr.f32.mxu0 0.0
  %968 = vmatmul.mubr.f32.gmra.mrb[0].mxu0 %v799
  %v969 = vpop.f32.mrb[0].mxu0
  %v970 = vadd.f32 %v750, %v969
  %v971 = vpop.f32.mrb[0].mxu0
  %972 = vmatprep.mubr.f32.mxu0 0.0
  %973 = vmatmul.mubr.f32.gmra.mrb[0].mxu0 %v802
  %v974 = vpop.f32.mrb[0].mxu0
  %v975 = vadd.f32 %v750, %v974
  %v976 = vpop.f32.mrb[0].mxu0
  %977 = vmatprep.mubr.f32.mxu0 0.0
  %978 = vmatmul.mubr.f32.gmra.mrb[0].mxu0 %v805
  %v979 = vpop.f32.mrb[0].mxu0
  %v980 = vadd.f32 %v750, %v979
  %v981 = vpop.f32.mrb[0].mxu0
  %982 = vmatprep.mubr.f32.mxu0 0.0
  %983 = vmatmul.mubr.f32.gmra.mrb[0].mxu0 %v808
  %v984 = vpop.f32.mrb[0].mxu0
  %v985 = vadd.f32 %v750, %v984
  %v986 = vpop.f32.mrb[0].mxu0
  %987 = vmatprep.mubr.f32.mxu0 0.0
  %988 = vmatmul.mubr.f32.gmra.mrb[0].mxu0 %v811
  %v989 = vpop.f32.mrb[0].mxu0
  %v990 = vadd.f32 %v750, %v989
  %v991 = vpop.f32.mrb[0].mxu0
  %992 = vmatprep.mubr.f32.mxu0 0.0
  %993 = vmatmul.mubr.f32.gmra.mrb[0].mxu0 %v814
  %v994 = vpop.f32.mrb[0].mxu0
  %v995 = vadd.f32 %v750, %v994
  %v996 = vpop.f32.mrb[0].mxu0
  %997 = vmatprep.mubr.f32.mxu0 0.0
  %998 = vmatmul.mubr.f32.gmra.mrb[0].mxu0 %v817
  %v999 = vpop.f32.mrb[0].mxu0
  %v1000 = vadd.f32 %v750, %v999
  %v1001 = vpop.f32.mrb[0].mxu0
  %1002 = vmatprep.mubr.f32.mxu0 0.0
  %1003 = vmatmul.mubr.f32.gmra.mrb[0].mxu0 %v820
  %v1004 = vpop.f32.mrb[0].mxu0
  %v1005 = vadd.f32 %v750, %v1004
  %v1006 = vpop.f32.mrb[0].mxu0
  %1007 = vmatprep.mubr.f32.mxu0 0.0
  %1008 = vmatmul.mubr.f32.gmra.mrb[0].mxu0 %v823
  %v1009 = vpop.f32.mrb[0].mxu0
  %v1010 = vadd.f32 %v750, %v1009
  %v1011 = vpop.f32.mrb[0].mxu0
  %1012 = vmatprep.mubr.f32.mxu0 0.0
  %1013 = vmatmul.mubr.f32.gmra.mrb[0].mxu0 %v826
  %v1014 = vpop.f32.mrb[0].mxu0
  %v1015 = vadd.f32 %v750, %v1014
  %v1016 = vpop.f32.mrb[0].mxu0
  %1017 = vdwg.mxu0
  %v1018 = vmax.f32 %v895, 0.0
  %v1019 = vmax.f32 %v900, 0.0
  %v1020 = vmax.f32 %v905, 0.0
  %v1021 = vmax.f32 %v910, 0.0
  %v1022 = vmax.f32 %v915, 0.0
  %v1023 = vmax.f32 %v920, 0.0
  %v1024 = vmax.f32 %v925, 0.0
  %v1025 = vmax.f32 %v930, 0.0
  %v1026 = vmax.f32 %v935, 0.0
  %v1027 = vmax.f32 %v940, 0.0
  %v1028 = vmax.f32 %v945, 0.0
  %v1029 = vmax.f32 %v950, 0.0
  %v1030 = vmax.f32 %v955, 0.0
  %v1031 = vmax.f32 %v960, 0.0
  %v1032 = vmax.f32 %v965, 0.0
  %v1033 = vmax.f32 %v970, 0.0
  %v1034 = vmax.f32 %v975, 0.0
  %v1035 = vmax.f32 %v980, 0.0
  %v1036 = vmax.f32 %v985, 0.0
  %v1037 = vmax.f32 %v990, 0.0
  %v1038 = vmax.f32 %v995, 0.0
  %v1039 = vmax.f32 %v1000, 0.0
  %v1040 = vmax.f32 %v1005, 0.0
  %v1041 = vmax.f32 %v1010, 0.0
  %v1042 = vmax.f32 %v1015, 0.0
  %v1043 = vld [vmem:[%s7] sm:$0x1]
  %v1045 = vlaneseq
  %v1046 = vshrl.u32 %v1045, 7
  %v1047 = vsub.s32 0, %v1046
  %v1048 = vrot.slane %v1043, %v1047
  %v1050 = vmul.f32 %v1018, %v1048
  %v1051 = vmul.f32 %v1019, %v1048
  %v1052 = vmul.f32 %v1020, %v1048
  %v1053 = vmul.f32 %v1021, %v1048
  %v1054 = vmul.f32 %v1022, %v1048
  %v1055 = vmul.f32 %v1023, %v1048
  %v1056 = vmul.f32 %v1024, %v1048
  %v1057 = vmul.f32 %v1025, %v1048
  %v1058 = vmul.f32 %v1026, %v1048
  %v1059 = vmul.f32 %v1027, %v1048
  %v1060 = vmul.f32 %v1028, %v1048
  %v1061 = vmul.f32 %v1029, %v1048
  %v1062 = vmul.f32 %v1030, %v1048
  %v1063 = vmul.f32 %v1031, %v1048
  %v1064 = vmul.f32 %v1032, %v1048
  %v1065 = vmul.f32 %v1033, %v1048
  %v1066 = vmul.f32 %v1034, %v1048
  %v1067 = vmul.f32 %v1035, %v1048
  %v1068 = vmul.f32 %v1036, %v1048
  %v1069 = vmul.f32 %v1037, %v1048
  %v1070 = vmul.f32 %v1038, %v1048
  %v1071 = vmul.f32 %v1039, %v1048
  %v1072 = vmul.f32 %v1040, %v1048
  %v1073 = vmul.f32 %v1041, %v1048
  %v1074 = vmul.f32 %v1042, %v1048
  %v1075 = vld [vmem:[%s8] sm:$0x1]
  %v1076 = vsel %vm752, %v1050, 0.0
  %v1077 = vsel %vm752, %v1051, 0.0
  %v1078 = vadd.f32 %v1076, %v1077
  %v1079 = vsel %vm752, %v1052, 0.0
  %v1080 = vadd.f32 %v1078, %v1079
  %v1081 = vsel %vm752, %v1053, 0.0
  %v1082 = vadd.f32 %v1080, %v1081
  %v1083 = vsel %vm752, %v1054, 0.0
  %v1084 = vadd.f32 %v1082, %v1083
  %v1085 = vsel %vm752, %v1055, 0.0
  %v1086 = vadd.f32 %v1084, %v1085
  %v1087 = vsel %vm752, %v1056, 0.0
  %v1088 = vadd.f32 %v1086, %v1087
  %v1089 = vsel %vm752, %v1057, 0.0
  %v1090 = vadd.f32 %v1088, %v1089
  %v1091 = vsel %vm752, %v1058, 0.0
  %v1092 = vadd.f32 %v1090, %v1091
  %v1093 = vsel %vm752, %v1059, 0.0
  %v1094 = vadd.f32 %v1092, %v1093
  %v1095 = vsel %vm752, %v1060, 0.0
  %v1096 = vadd.f32 %v1094, %v1095
  %v1097 = vsel %vm752, %v1061, 0.0
  %v1098 = vadd.f32 %v1096, %v1097
  %v1099 = vsel %vm752, %v1062, 0.0
  %v1100 = vadd.f32 %v1098, %v1099
  %v1101 = vsel %vm752, %v1063, 0.0
  %v1102 = vadd.f32 %v1100, %v1101
  %v1103 = vsel %vm752, %v1064, 0.0
  %v1104 = vadd.f32 %v1102, %v1103
  %v1105 = vsel %vm752, %v1065, 0.0
  %v1106 = vadd.f32 %v1104, %v1105
  %v1107 = vsel %vm752, %v1066, 0.0
  %v1108 = vadd.f32 %v1106, %v1107
  %v1109 = vsel %vm752, %v1067, 0.0
  %v1110 = vadd.f32 %v1108, %v1109
  %v1111 = vsel %vm752, %v1068, 0.0
  %v1112 = vadd.f32 %v1110, %v1111
  %v1113 = vsel %vm752, %v1069, 0.0
  %v1114 = vadd.f32 %v1112, %v1113
  %v1115 = vsel %vm752, %v1070, 0.0
  %v1116 = vadd.f32 %v1114, %v1115
  %v1117 = vsel %vm752, %v1071, 0.0
  %v1118 = vadd.f32 %v1116, %v1117
  %v1119 = vsel %vm752, %v1072, 0.0
  %v1120 = vadd.f32 %v1118, %v1119
  %v1121 = vsel %vm752, %v1073, 0.0
  %v1122 = vadd.f32 %v1120, %v1121
  %v1123 = vsel %vm752, %v1074, 0.0
  %v1124 = vadd.f32 %v1122, %v1123
  %v1125 = vrot.slane %v1124, 4
  %v1126 = vadd.f32 %v1124, %v1125
  %v1127 = vrot.slane %v1126, 2
  %v1128 = vadd.f32 %v1126, %v1127
  %v1129 = vrot.slane %v1128, 1
  %v1130 = vadd.f32 %v1128, %v1129
  %v1131 = vadd.f32 %v1075, %v1130
  %vm1132 = vcmask 253952
  %1133 = vst.msk [vmem:[%s8] sm:$0x1] %vm1132, %v1131
  // Predicated region
  $region38: #{actor_loss.1} parent=0 // pred_check
    _
  $region39: #{actor_loss.1} parent=0 // pred_check_branch
    %1135 = sbr.rel (0) target = $region41
  $region40: #{actor_loss.1} parent=0 // pred_region
    _
  $region41: #{actor_loss.1} parent=0 // pred_fallthru
    _
  // Predicated region
  $region42: #{actor_loss.1} parent=0 // pred_check
    _
  $region43: #{actor_loss.1} parent=0 // pred_check_branch
    %1137 = sbr.rel (0) target = $region45
  $region44: #{actor_loss.1} parent=0 // pred_region
    _
  $region45: #{actor_loss.1} parent=0 // pred_fallthru
    _

</llo_original>
